<compile_context>
chip_gen: v6e
topology: v6e:2x2x1
jax: 0.10.0
libtpu: 0.0.40
codegen_flags: <defaults>
</compile_context>

<pallas_src>
import math
import functools

import jax
import jax.numpy as jnp
from jax.experimental import pallas as pl
from jax.experimental.pallas import tpu as pltpu


def _d_projector_kernel(
    desc_ref,      # [bt, T, L]   bf16   text hidden states
    vis_ref,       # [bt, C, HW]  bf16   channel-major visual tokens
    w_l2v_ref,     # [L, C]       bf16
    w_qol_ref,     # [3, C, C]    bf16   (0: wq, 1: wo, 2: wlin), [in, out] layout
    b_row_ref,     # [4, C]       f32    (0: b_l2v, 1: bq, 2: bo, 3: blin)
    wkv_t_ref,     # [2C, C]      bf16   wk.T stacked over wv.T ([out, in] layout)
    bkv_ref,       # [2C, 1]      f32    bk stacked over bv, as a column
    seg_ref,       # [nH, C]      f32    seg[h, c] = 1 iff channel c is in head h
    out_ref,       # [bt, C]      f32
    *, num_heads):
    f32 = jnp.float32
    bf16 = jnp.bfloat16
    bt, C, HW = vis_ref.shape
    hd = C // num_heads
    inv_sqrt_hd = 1.0 / math.sqrt(hd)

    b_rows = b_row_ref[...]
    b_l2v = b_rows[0:1, :]
    b_q = b_rows[1:2, :]
    b_o = b_rows[2:3, :]
    b_lin = b_rows[3:4, :]

    # --- desc_embs.mean(dim=1) + lang2vis + q projection (whole batch tile) ---
    desc_avg = jnp.mean(desc_ref[...].astype(f32), axis=1)                 # [bt, L]
    q_vis = jnp.dot(desc_avg.astype(bf16), w_l2v_ref[...],
                    preferred_element_type=f32) + b_l2v                    # [bt, C]
    q = jnp.dot(q_vis.astype(bf16), w_qol_ref[0],
                preferred_element_type=f32) + b_q                          # [bt, C]
    q_scaled = q * inv_sqrt_hd                                             # fold 1/sqrt(hd)

    wkv_t = wkv_t_ref[...]                                                 # [2C, C]  bf16
    bkv = bkv_ref[...]                                                     # [2C, 1]  f32
    seg = seg_ref[...]                                                     # [nH, C]  f32

    # --- per-batch-element cross attention (lane-dense [C, HW] layout) -------
    attn_rows = []
    for b in range(bt):
        vis_b = vis_ref[b]                                                 # [C, HW] bf16
        # fused k/v projection on the MXU: [2C, C] @ [C, HW]
        kvT = jnp.dot(wkv_t, vis_b, preferred_element_type=f32) + bkv      # [2C, HW]
        kT = kvT[:C].astype(bf16)                                          # [C, HW]
        vT = kvT[C:].astype(bf16)                                          # [C, HW]

        # per-head scores: seg row-selects + MXU contraction over channels
        qs = (seg * q_scaled[b:b + 1, :]).astype(bf16)                     # [nH, C]
        scores = jnp.dot(qs, kT, preferred_element_type=f32)               # [nH, HW]

        # softmax over HW (lane axis)
        m = jnp.max(scores, axis=-1, keepdims=True)
        e = jnp.exp(scores - m)
        s = jnp.sum(e, axis=-1, keepdims=True)
        attn_w = (e * pl.reciprocal(s, approx=True)).astype(bf16)          # [nH, HW]

        # attention output: MXU contraction over HW, then per-head channel select
        a_hc = jax.lax.dot_general(attn_w, vT,
                                   (((1,), (1,)), ((), ())),
                                   preferred_element_type=f32)             # [nH, C]
        attn_rows.append(jnp.sum(seg * a_hc, axis=0, keepdims=True))       # [1, C]

    attn = jnp.concatenate(attn_rows, axis=0)                              # [bt, C]

    # --- output projection, residual with q_vis, final linear ----------------
    attn_out = jnp.dot(attn.astype(bf16), w_qol_ref[1],
                       preferred_element_type=f32) + b_o                   # [bt, C]
    res = attn_out + q_vis
    out = jnp.dot(res.astype(bf16), w_qol_ref[2],
                  preferred_element_type=f32) + b_lin                      # [bt, C]
    out_ref[...] = out


def d_projector_pallas(desc_embs, vis_feat, params, num_heads=8):
    """desc_embs: [B, T, L] (f32); vis_feat: [B, C, H, W] (f32) -> [B, C] (f32)."""
    B, T, L = desc_embs.shape
    Bv, C, H, W = vis_feat.shape
    assert B == Bv
    assert C % num_heads == 0, "vis_dim must be divisible by num_heads"
    HW = H * W
    nH = num_heads
    hd = C // nH
    f32, bf16 = jnp.float32, jnp.bfloat16

    # batch tile: whole batch per step when small, 8 per step otherwise
    bt = min(B, 8)
    n_tiles = -(-B // bt)
    B_pad = n_tiles * bt

    # lane-dense visual layout [B, C, HW] — only a (free) reshape, no transpose
    vis3 = vis_feat.reshape(B, C, HW).astype(bf16)
    desc = desc_embs.astype(bf16)
    if B_pad != B:
        vis3 = jnp.pad(vis3, ((0, B_pad - B), (0, 0), (0, 0)))
        desc = jnp.pad(desc, ((0, B_pad - B), (0, 0), (0, 0)))

    # consolidated weights / biases
    w_l2v = params["w_l2v"].astype(bf16)                                        # [L, C]
    w_qol = jnp.stack([params["wq"], params["wo"], params["wlin"]],
                      axis=0).astype(bf16)                                      # [3, C, C]
    b_row = jnp.concatenate([params["b_l2v"], params["bq"],
                             params["bo"], params["blin"]], axis=0).astype(f32)  # [4, C]
    wkv_t = jnp.concatenate([params["wk"].T, params["wv"].T],
                            axis=0).astype(bf16)                                # [2C, C]
    bkv = jnp.concatenate([params["bk"], params["bv"]], axis=1).T.astype(f32)   # [2C, 1]
    chan = jnp.arange(C, dtype=jnp.int32)
    seg = (chan[None, :] // hd ==
           jnp.arange(nH, dtype=jnp.int32)[:, None]).astype(f32)                # [nH, C]

    grid_spec = pltpu.PrefetchScalarGridSpec(
        num_scalar_prefetch=0,
        grid=(n_tiles,),
        in_specs=[
            pl.BlockSpec((bt, T, L), lambda i: (i, 0, 0)),     # desc
            pl.BlockSpec((bt, C, HW), lambda i: (i, 0, 0)),    # vis (channel-major)
            pl.BlockSpec((L, C), lambda i: (0, 0)),            # w_l2v
            pl.BlockSpec((3, C, C), lambda i: (0, 0, 0)),      # wq / wo / wlin
            pl.BlockSpec((4, C), lambda i: (0, 0)),            # row biases
            pl.BlockSpec((2 * C, C), lambda i: (0, 0)),        # fused wk|wv (transposed)
            pl.BlockSpec((2 * C, 1), lambda i: (0, 0)),        # fused bk|bv column
            pl.BlockSpec((nH, C), lambda i: (0, 0)),           # head-membership seg
        ],
        out_specs=pl.BlockSpec((bt, C), lambda i: (i, 0)),
    )

    out = pl.pallas_call(
        functools.partial(_d_projector_kernel, num_heads=num_heads),
        out_shape=jax.ShapeDtypeStruct((B_pad, C), f32),
        grid_spec=grid_spec,
        compiler_params=pltpu.CompilerParams(
            dimension_semantics=("parallel",)),
    )(desc, vis3, w_l2v, w_qol, b_row, wkv_t, bkv, seg)
    return out[:B]


def d_projector_reference(desc_embs, vis_feat, params, num_heads=8):
    """Pure-JAX f32 reference reproducing the PyTorch forward (eval mode, dropout=0)."""
    B, C, H, W = vis_feat.shape
    hd = C // num_heads
    vis_tok = jnp.transpose(vis_feat.reshape(B, C, H * W), (0, 2, 1))           # [B, HW, C]

    desc_avg = desc_embs.mean(axis=1)                                           # [B, L]
    q_vis = desc_avg @ params["w_l2v"] + params["b_l2v"]                        # [B, C]

    q = q_vis @ params["wq"] + params["bq"]                                     # [B, C]
    k = vis_tok @ params["wk"] + params["bk"]                                   # [B, HW, C]
    v = vis_tok @ params["wv"] + params["bv"]                                   # [B, HW, C]

    q_h = q.reshape(B, num_heads, hd)
    k_h = k.reshape(B, -1, num_heads, hd)
    v_h = v.reshape(B, -1, num_heads, hd)
    scores = jnp.einsum("bhd,bkhd->bhk", q_h, k_h) / math.sqrt(hd)              # [B, nH, HW]
    w = jax.nn.softmax(scores, axis=-1)
    attn = jnp.einsum("bhk,bkhd->bhd", w, v_h).reshape(B, C)                    # [B, C]

    attn_out = attn @ params["wo"] + params["bo"]
    return (attn_out + q_vis) @ params["wlin"] + params["blin"]


def init_params(key, lang_dim, vis_dim):
    """Deterministic synthetic parameters.  PyTorch Linear(in, out) weights are
    stored transposed here as [in, out] so x @ W + b matches the reference."""
    keys = jax.random.split(key, 12)

    def lin(kw, kb, d_in, d_out):
        s = 1.0 / math.sqrt(d_in)
        w = jax.random.uniform(kw, (d_in, d_out), jnp.float32, -s, s)
        b = jax.random.uniform(kb, (1, d_out), jnp.float32, -s, s)
        return w, b

    p = {}
    p["w_l2v"], p["b_l2v"] = lin(keys[0], keys[1], lang_dim, vis_dim)
    p["wq"], p["bq"] = lin(keys[2], keys[3], vis_dim, vis_dim)
    p["wk"], p["bk"] = lin(keys[4], keys[5], vis_dim, vis_dim)
    p["wv"], p["bv"] = lin(keys[6], keys[7], vis_dim, vis_dim)
    p["wo"], p["bo"] = lin(keys[8], keys[9], vis_dim, vis_dim)
    p["wlin"], p["blin"] = lin(keys[10], keys[11], vis_dim, vis_dim)
    return p


if __name__ == "__main__":
    B, T, L = 2, 8, 48          # lang_dim != vis_dim -> exercises lang2vis Linear
    C, H, W = 32, 16, 16        # vis_dim = 32, 8 heads -> head_dim = 4
    n_heads = 8

    key = jax.random.PRNGKey(0)
    k_desc, k_vis, k_par = jax.random.split(key, 3)
    desc_embs = jax.random.normal(k_desc, (B, T, L), jnp.float32)
    vis_feat = jax.random.normal(k_vis, (B, C, H, W), jnp.float32)
    params = init_params(k_par, L, C)

    out = d_projector_pallas(desc_embs, vis_feat, params, num_heads=n_heads)
    out = jax.block_until_ready(out)

    ref = d_projector_reference(desc_embs, vis_feat, params, num_heads=n_heads)
    ref = jax.block_until_ready(ref)

    assert out.shape == (B, C), out.shape
    # bf16 compute + approx-reciprocal softmax vs f32 reference: loose-ish tolerance
    if not jnp.allclose(out, ref, rtol=2e-2, atol=2e-2):
        raise AssertionError(
            f"mismatch: max abs err {float(jnp.max(jnp.abs(out - ref)))}")
    print("KERNEL_OK")
</pallas_src>

<mosaic_0001>
module attributes {stable_mosaic.version = 11 : i64} {
  func.func @_d_projector_kernel(%arg0: i32, %arg1: memref<2x8x48xbf16, #tpu.memory_space<vmem>>, %arg2: memref<2x32x256xbf16, #tpu.memory_space<vmem>>, %arg3: memref<48x32xbf16, #tpu.memory_space<vmem>>, %arg4: memref<3x32x32xbf16, #tpu.memory_space<vmem>>, %arg5: memref<4x32xf32, #tpu.memory_space<vmem>>, %arg6: memref<64x32xbf16, #tpu.memory_space<vmem>>, %arg7: memref<64x1xf32, #tpu.memory_space<vmem>>, %arg8: memref<8x32xf32, #tpu.memory_space<vmem>>, %arg9: memref<2x32xf32, #tpu.memory_space<vmem>>) attributes {dimension_semantics = [#tpu.dimension_semantics<parallel>], iteration_bounds = array<i64: 1>, scalar_prefetch = 0 : i64, scratch_operands = 0 : i64, tpu.core_type = #tpu.core_type<tc>, window_params = [{transform_indices = @transform_0, window_bounds = array<i64: 2, 8, 48>}, {transform_indices = @transform_1, window_bounds = array<i64: 2, 32, 256>}, {pipeline_mode = #tpu.pipeline_mode<synchronous>, transform_indices = @transform_2, window_bounds = array<i64: 48, 32>}, {pipeline_mode = #tpu.pipeline_mode<synchronous>, transform_indices = @transform_3, window_bounds = array<i64: 3, 32, 32>}, {pipeline_mode = #tpu.pipeline_mode<synchronous>, transform_indices = @transform_4, window_bounds = array<i64: 4, 32>}, {pipeline_mode = #tpu.pipeline_mode<synchronous>, transform_indices = @transform_5, window_bounds = array<i64: 64, 32>}, {pipeline_mode = #tpu.pipeline_mode<synchronous>, transform_indices = @transform_6, window_bounds = array<i64: 64, 1>}, {pipeline_mode = #tpu.pipeline_mode<synchronous>, transform_indices = @transform_7, window_bounds = array<i64: 8, 32>}, {transform_indices = @transform_8, window_bounds = array<i64: 2, 32>}]} {
    %c0 = arith.constant 0 : index
    %c0_0 = arith.constant 0 : index
    %0 = vector.load %arg5[%c0, %c0_0] : memref<4x32xf32, #tpu.memory_space<vmem>>, vector<4x32xf32>
    %1 = vector.extract_strided_slice %0 {offsets = [0, 0], sizes = [1, 32], strides = [1, 1]} : vector<4x32xf32> to vector<1x32xf32>
    %2 = vector.extract_strided_slice %0 {offsets = [1, 0], sizes = [1, 32], strides = [1, 1]} : vector<4x32xf32> to vector<1x32xf32>
    %3 = vector.extract_strided_slice %0 {offsets = [2, 0], sizes = [1, 32], strides = [1, 1]} : vector<4x32xf32> to vector<1x32xf32>
    %4 = vector.extract_strided_slice %0 {offsets = [3, 0], sizes = [1, 32], strides = [1, 1]} : vector<4x32xf32> to vector<1x32xf32>
    %c0_1 = arith.constant 0 : index
    %c0_2 = arith.constant 0 : index
    %c0_3 = arith.constant 0 : index
    %5 = vector.load %arg1[%c0_1, %c0_2, %c0_3] : memref<2x8x48xbf16, #tpu.memory_space<vmem>>, vector<2x8x48xbf16>
    %6 = arith.extf %5 : vector<2x8x48xbf16> to vector<2x8x48xf32>
    %cst = arith.constant dense<0.000000e+00> : vector<2x48xf32>
    %7 = vector.multi_reduction <add>, %6, %cst [1] : vector<2x8x48xf32> to vector<2x48xf32>
    %cst_4 = arith.constant 8.000000e+00 : f32
    %8 = vector.broadcast %cst_4 : f32 to vector<2x48xf32>
    %9 = arith.divf %7, %8 : vector<2x48xf32>
    %10 = arith.truncf %9 : vector<2x48xf32> to vector<2x48xbf16>
    %c0_5 = arith.constant 0 : index
    %c0_6 = arith.constant 0 : index
    %11 = vector.load %arg3[%c0_5, %c0_6] : memref<48x32xbf16, #tpu.memory_space<vmem>>, vector<48x32xbf16>
    %cst_7 = arith.constant dense<0.000000e+00> : vector<2x32xf32>
    %12 = tpu.matmul %10, %11, %cst_7 {dimension_numbers = #tpu.dot_dimension_numbers<[1], [0], [0], [1], [0, 0, 1, 1], [], []>} : vector<2x48xbf16>, vector<48x32xbf16>, vector<2x32xf32> -> vector<2x32xf32>
    %13 = vector.broadcast %1 : vector<1x32xf32> to vector<2x32xf32>
    %14 = arith.addf %12, %13 : vector<2x32xf32>
    %15 = arith.truncf %14 : vector<2x32xf32> to vector<2x32xbf16>
    %c0_8 = arith.constant 0 : index
    %c0_9 = arith.constant 0 : index
    %c0_10 = arith.constant 0 : index
    %16 = vector.load %arg4[%c0_8, %c0_9, %c0_10] : memref<3x32x32xbf16, #tpu.memory_space<vmem>>, vector<1x32x32xbf16>
    %17 = vector.shape_cast %16 : vector<1x32x32xbf16> to vector<32x32xbf16>
    %cst_11 = arith.constant dense<0.000000e+00> : vector<2x32xf32>
    %18 = tpu.matmul %15, %17, %cst_11 {dimension_numbers = #tpu.dot_dimension_numbers<[1], [0], [0], [1], [0, 0, 1, 1], [], []>} : vector<2x32xbf16>, vector<32x32xbf16>, vector<2x32xf32> -> vector<2x32xf32>
    %19 = vector.broadcast %2 : vector<1x32xf32> to vector<2x32xf32>
    %20 = arith.addf %18, %19 : vector<2x32xf32>
    %cst_12 = arith.constant 5.000000e-01 : f32
    %21 = vector.broadcast %cst_12 : f32 to vector<2x32xf32>
    %22 = arith.mulf %20, %21 : vector<2x32xf32>
    %c0_13 = arith.constant 0 : index
    %c0_14 = arith.constant 0 : index
    %23 = vector.load %arg6[%c0_13, %c0_14] : memref<64x32xbf16, #tpu.memory_space<vmem>>, vector<64x32xbf16>
    %c0_15 = arith.constant 0 : index
    %c0_16 = arith.constant 0 : index
    %24 = vector.load %arg7[%c0_15, %c0_16] : memref<64x1xf32, #tpu.memory_space<vmem>>, vector<64x1xf32>
    %c0_17 = arith.constant 0 : index
    %c0_18 = arith.constant 0 : index
    %25 = vector.load %arg8[%c0_17, %c0_18] : memref<8x32xf32, #tpu.memory_space<vmem>>, vector<8x32xf32>
    %c0_19 = arith.constant 0 : index
    %c0_20 = arith.constant 0 : index
    %c0_21 = arith.constant 0 : index
    %26 = vector.load %arg2[%c0_19, %c0_20, %c0_21] : memref<2x32x256xbf16, #tpu.memory_space<vmem>>, vector<1x32x256xbf16>
    %27 = vector.shape_cast %26 : vector<1x32x256xbf16> to vector<32x256xbf16>
    %cst_22 = arith.constant dense<0.000000e+00> : vector<64x256xf32>
    %28 = tpu.matmul %23, %27, %cst_22 {dimension_numbers = #tpu.dot_dimension_numbers<[1], [0], [0], [1], [0, 0, 1, 1], [], []>} : vector<64x32xbf16>, vector<32x256xbf16>, vector<64x256xf32> -> vector<64x256xf32>
    %29 = vector.broadcast %24 : vector<64x1xf32> to vector<64x256xf32>
    %30 = arith.addf %28, %29 : vector<64x256xf32>
    %31 = vector.extract_strided_slice %30 {offsets = [0, 0], sizes = [32, 256], strides = [1, 1]} : vector<64x256xf32> to vector<32x256xf32>
    %32 = arith.truncf %31 : vector<32x256xf32> to vector<32x256xbf16>
    %33 = vector.extract_strided_slice %30 {offsets = [32, 0], sizes = [32, 256], strides = [1, 1]} : vector<64x256xf32> to vector<32x256xf32>
    %34 = arith.truncf %33 : vector<32x256xf32> to vector<32x256xbf16>
    %35 = vector.extract_strided_slice %22 {offsets = [0, 0], sizes = [1, 32], strides = [1, 1]} : vector<2x32xf32> to vector<1x32xf32>
    %36 = vector.broadcast %35 : vector<1x32xf32> to vector<8x32xf32>
    %37 = arith.mulf %25, %36 : vector<8x32xf32>
    %38 = arith.truncf %37 : vector<8x32xf32> to vector<8x32xbf16>
    %cst_23 = arith.constant dense<0.000000e+00> : vector<8x256xf32>
    %39 = tpu.matmul %38, %32, %cst_23 {dimension_numbers = #tpu.dot_dimension_numbers<[1], [0], [0], [1], [0, 0, 1, 1], [], []>} : vector<8x32xbf16>, vector<32x256xbf16>, vector<8x256xf32> -> vector<8x256xf32>
    %cst_24 = arith.constant dense<0xFF800000> : vector<8xf32>
    %40 = vector.multi_reduction <maximumf>, %39, %cst_24 [1] : vector<8x256xf32> to vector<8xf32>
    %41 = vector.shape_cast %40 : vector<8xf32> to vector<8x1xf32>
    %42 = vector.broadcast %41 : vector<8x1xf32> to vector<8x256xf32>
    %43 = arith.subf %39, %42 : vector<8x256xf32>
    %44 = math.exp %43 : vector<8x256xf32>
    %cst_25 = arith.constant dense<0.000000e+00> : vector<8xf32>
    %45 = vector.multi_reduction <add>, %44, %cst_25 [1] : vector<8x256xf32> to vector<8xf32>
    %46 = vector.shape_cast %45 : vector<8xf32> to vector<8x1xf32>
    %47 = tpu.reciprocal %46 {approx = true} : vector<8x1xf32> -> vector<8x1xf32>
    %48 = vector.broadcast %47 : vector<8x1xf32> to vector<8x256xf32>
    %49 = arith.mulf %44, %48 : vector<8x256xf32>
    %50 = arith.truncf %49 : vector<8x256xf32> to vector<8x256xbf16>
    %cst_26 = arith.constant dense<0.000000e+00> : vector<8x32xf32>
    %51 = tpu.matmul %50, %34, %cst_26 {dimension_numbers = #tpu.dot_dimension_numbers<[1], [1], [0], [0], [0, 0, 1, 0], [], []>} : vector<8x256xbf16>, vector<32x256xbf16>, vector<8x32xf32> -> vector<8x32xf32>
    %52 = arith.mulf %25, %51 : vector<8x32xf32>
    %cst_27 = arith.constant dense<0.000000e+00> : vector<32xf32>
    %53 = vector.multi_reduction <add>, %52, %cst_27 [0] : vector<8x32xf32> to vector<32xf32>
    %54 = vector.shape_cast %53 : vector<32xf32> to vector<1x32xf32>
    %c1 = arith.constant 1 : index
    %c0_28 = arith.constant 0 : index
    %c0_29 = arith.constant 0 : index
    %55 = vector.load %arg2[%c1, %c0_28, %c0_29] : memref<2x32x256xbf16, #tpu.memory_space<vmem>>, vector<1x32x256xbf16>
    %56 = vector.shape_cast %55 : vector<1x32x256xbf16> to vector<32x256xbf16>
    %cst_30 = arith.constant dense<0.000000e+00> : vector<64x256xf32>
    %57 = tpu.matmul %23, %56, %cst_30 {dimension_numbers = #tpu.dot_dimension_numbers<[1], [0], [0], [1], [0, 0, 1, 1], [], []>} : vector<64x32xbf16>, vector<32x256xbf16>, vector<64x256xf32> -> vector<64x256xf32>
    %58 = vector.broadcast %24 : vector<64x1xf32> to vector<64x256xf32>
    %59 = arith.addf %57, %58 : vector<64x256xf32>
    %60 = vector.extract_strided_slice %59 {offsets = [0, 0], sizes = [32, 256], strides = [1, 1]} : vector<64x256xf32> to vector<32x256xf32>
    %61 = arith.truncf %60 : vector<32x256xf32> to vector<32x256xbf16>
    %62 = vector.extract_strided_slice %59 {offsets = [32, 0], sizes = [32, 256], strides = [1, 1]} : vector<64x256xf32> to vector<32x256xf32>
    %63 = arith.truncf %62 : vector<32x256xf32> to vector<32x256xbf16>
    %64 = vector.extract_strided_slice %22 {offsets = [1, 0], sizes = [1, 32], strides = [1, 1]} : vector<2x32xf32> to vector<1x32xf32>
    %65 = vector.broadcast %64 : vector<1x32xf32> to vector<8x32xf32>
    %66 = arith.mulf %25, %65 : vector<8x32xf32>
    %67 = arith.truncf %66 : vector<8x32xf32> to vector<8x32xbf16>
    %cst_31 = arith.constant dense<0.000000e+00> : vector<8x256xf32>
    %68 = tpu.matmul %67, %61, %cst_31 {dimension_numbers = #tpu.dot_dimension_numbers<[1], [0], [0], [1], [0, 0, 1, 1], [], []>} : vector<8x32xbf16>, vector<32x256xbf16>, vector<8x256xf32> -> vector<8x256xf32>
    %cst_32 = arith.constant dense<0xFF800000> : vector<8xf32>
    %69 = vector.multi_reduction <maximumf>, %68, %cst_32 [1] : vector<8x256xf32> to vector<8xf32>
    %70 = vector.shape_cast %69 : vector<8xf32> to vector<8x1xf32>
    %71 = vector.broadcast %70 : vector<8x1xf32> to vector<8x256xf32>
    %72 = arith.subf %68, %71 : vector<8x256xf32>
    %73 = math.exp %72 : vector<8x256xf32>
    %cst_33 = arith.constant dense<0.000000e+00> : vector<8xf32>
    %74 = vector.multi_reduction <add>, %73, %cst_33 [1] : vector<8x256xf32> to vector<8xf32>
    %75 = vector.shape_cast %74 : vector<8xf32> to vector<8x1xf32>
    %76 = tpu.reciprocal %75 {approx = true} : vector<8x1xf32> -> vector<8x1xf32>
    %77 = vector.broadcast %76 : vector<8x1xf32> to vector<8x256xf32>
    %78 = arith.mulf %73, %77 : vector<8x256xf32>
    %79 = arith.truncf %78 : vector<8x256xf32> to vector<8x256xbf16>
    %cst_34 = arith.constant dense<0.000000e+00> : vector<8x32xf32>
    %80 = tpu.matmul %79, %63, %cst_34 {dimension_numbers = #tpu.dot_dimension_numbers<[1], [1], [0], [0], [0, 0, 1, 0], [], []>} : vector<8x256xbf16>, vector<32x256xbf16>, vector<8x32xf32> -> vector<8x32xf32>
    %81 = arith.mulf %25, %80 : vector<8x32xf32>
    %cst_35 = arith.constant dense<0.000000e+00> : vector<32xf32>
    %82 = vector.multi_reduction <add>, %81, %cst_35 [0] : vector<8x32xf32> to vector<32xf32>
    %83 = vector.shape_cast %82 : vector<32xf32> to vector<1x32xf32>
    %84 = tpu.concatenate %54, %83 in 0 : vector<1x32xf32>, vector<1x32xf32> -> vector<2x32xf32>
    %85 = arith.truncf %84 : vector<2x32xf32> to vector<2x32xbf16>
    %c1_36 = arith.constant 1 : index
    %c0_37 = arith.constant 0 : index
    %c0_38 = arith.constant 0 : index
    %86 = vector.load %arg4[%c1_36, %c0_37, %c0_38] : memref<3x32x32xbf16, #tpu.memory_space<vmem>>, vector<1x32x32xbf16>
    %87 = vector.shape_cast %86 : vector<1x32x32xbf16> to vector<32x32xbf16>
    %cst_39 = arith.constant dense<0.000000e+00> : vector<2x32xf32>
    %88 = tpu.matmul %85, %87, %cst_39 {dimension_numbers = #tpu.dot_dimension_numbers<[1], [0], [0], [1], [0, 0, 1, 1], [], []>} : vector<2x32xbf16>, vector<32x32xbf16>, vector<2x32xf32> -> vector<2x32xf32>
    %89 = vector.broadcast %3 : vector<1x32xf32> to vector<2x32xf32>
    %90 = arith.addf %88, %89 : vector<2x32xf32>
    %91 = arith.addf %90, %14 : vector<2x32xf32>
    %92 = arith.truncf %91 : vector<2x32xf32> to vector<2x32xbf16>
    %c2 = arith.constant 2 : index
    %c0_40 = arith.constant 0 : index
    %c0_41 = arith.constant 0 : index
    %93 = vector.load %arg4[%c2, %c0_40, %c0_41] : memref<3x32x32xbf16, #tpu.memory_space<vmem>>, vector<1x32x32xbf16>
    %94 = vector.shape_cast %93 : vector<1x32x32xbf16> to vector<32x32xbf16>
    %cst_42 = arith.constant dense<0.000000e+00> : vector<2x32xf32>
    %95 = tpu.matmul %92, %94, %cst_42 {dimension_numbers = #tpu.dot_dimension_numbers<[1], [0], [0], [1], [0, 0, 1, 1], [], []>} : vector<2x32xbf16>, vector<32x32xbf16>, vector<2x32xf32> -> vector<2x32xf32>
    %96 = vector.broadcast %4 : vector<1x32xf32> to vector<2x32xf32>
    %97 = arith.addf %95, %96 : vector<2x32xf32>
    %c0_43 = arith.constant 0 : index
    %c0_44 = arith.constant 0 : index
    %98 = vector.load %arg9[%c0_43, %c0_44] : memref<2x32xf32, #tpu.memory_space<vmem>>, vector<2x32xf32>
    tpu.vector_store %arg9[%c0_43, %c0_44], %97 {strides = array<i32>} : memref<2x32xf32, #tpu.memory_space<vmem>>, vector<2x32xf32>,
    return
  }
  func.func @transform_0(%arg0: i32) -> (i32, i32, i32) {
    %c0_i32 = arith.constant 0 : i32
    %c0_i32_0 = arith.constant 0 : i32
    %c0_i32_1 = arith.constant 0 : i32
    return %arg0, %c0_i32, %c0_i32_0 : i32, i32, i32
  }
  func.func @transform_1(%arg0: i32) -> (i32, i32, i32) {
    %c0_i32 = arith.constant 0 : i32
    %c0_i32_0 = arith.constant 0 : i32
    %c0_i32_1 = arith.constant 0 : i32
    return %arg0, %c0_i32, %c0_i32_0 : i32, i32, i32
  }
  func.func @transform_2(%arg0: i32) -> (i32, i32) {
    %c0_i32 = arith.constant 0 : i32
    %c0_i32_0 = arith.constant 0 : i32
    %c0_i32_1 = arith.constant 0 : i32
    return %c0_i32, %c0_i32_0 : i32, i32
  }
  func.func @transform_3(%arg0: i32) -> (i32, i32, i32) {
    %c0_i32 = arith.constant 0 : i32
    %c0_i32_0 = arith.constant 0 : i32
    %c0_i32_1 = arith.constant 0 : i32
    %c0_i32_2 = arith.constant 0 : i32
    return %c0_i32, %c0_i32_0, %c0_i32_1 : i32, i32, i32
  }
  func.func @transform_4(%arg0: i32) -> (i32, i32) {
    %c0_i32 = arith.constant 0 : i32
    %c0_i32_0 = arith.constant 0 : i32
    %c0_i32_1 = arith.constant 0 : i32
    return %c0_i32, %c0_i32_0 : i32, i32
  }
  func.func @transform_5(%arg0: i32) -> (i32, i32) {
    %c0_i32 = arith.constant 0 : i32
    %c0_i32_0 = arith.constant 0 : i32
    %c0_i32_1 = arith.constant 0 : i32
    return %c0_i32, %c0_i32_0 : i32, i32
  }
  func.func @transform_6(%arg0: i32) -> (i32, i32) {
    %c0_i32 = arith.constant 0 : i32
    %c0_i32_0 = arith.constant 0 : i32
    %c0_i32_1 = arith.constant 0 : i32
    return %c0_i32, %c0_i32_0 : i32, i32
  }
  func.func @transform_7(%arg0: i32) -> (i32, i32) {
    %c0_i32 = arith.constant 0 : i32
    %c0_i32_0 = arith.constant 0 : i32
    %c0_i32_1 = arith.constant 0 : i32
    return %c0_i32, %c0_i32_0 : i32, i32
  }
  func.func @transform_8(%arg0: i32) -> (i32, i32) {
    %c0_i32 = arith.constant 0 : i32
    %c0_i32_0 = arith.constant 0 : i32
    return %arg0, %c0_i32 : i32, i32
  }
}

</mosaic_0001>

<llo_original>
// kernel: tpu_custom_call.1
$region0: #{tpu_custom_call.1}
  #allocation0 [shape = 'u32[]', space=smem, size = 0x4, offset = 0x4, fixed_abs, tag = 'smem constant byte address 0x4 - core index']
  #allocation1 [shape = 'u32[144,128]{1,0:T(1,128)}', space=vmem, size = 0x12000, scoped, tag = 'internal scratch']
  %s0 = inlined_call_operand.vmem [shape: bf16[2,8,48], index: 0, kind: input, shape index: {}]
  %s1 = inlined_call_operand.vmem [shape: bf16[2,32,256], index: 1, kind: input, shape index: {}]
  %s2 = inlined_call_operand.vmem [shape: bf16[48,32], index: 2, kind: input, shape index: {}]
  %s3 = inlined_call_operand.vmem [shape: bf16[3,32,32], index: 3, kind: input, shape index: {}]
  %s4 = inlined_call_operand.vmem [shape: f32[4,32], index: 4, kind: input, shape index: {}]
  %s5 = inlined_call_operand.vmem [shape: bf16[64,32], index: 5, kind: input, shape index: {}]
  %s6 = inlined_call_operand.vmem [shape: f32[64,1], index: 6, kind: input, shape index: {}]
  %s7 = inlined_call_operand.vmem [shape: f32[8,32], index: 7, kind: input, shape index: {}]
  %s8 = inlined_call_operand.hbm [shape: f32[2,32], index: 8, kind: output, shape index: {}]
  %s9 = sld [smem:[#allocation0]]
  $region42: #{tpu_custom_call.1} parent=0
    _
  %s11 = ssub.s32 1, %s9
  %s12 = scalar_select 0, %s11, %s9
  $region1: #{tpu_custom_call.1} parent=0
    #allocation2 [shape = 'u8[1024]{0}', space=vmem, size = 0x400, scoped, tag = 'output window, operand 0, single buffered']
    #allocation3 [shape = 's32[1]{0}', space=sflag, size = 0x4, scoped, tag = 'scoped memory for tpu_custom_call.1']
    %13 = vsyncpa [#allocation3], 0
    // Predicated region
    $region2: #{tpu_custom_call.1} parent=1 // pred_check
      _
    $region3: #{tpu_custom_call.1} parent=1 // pred_check_branch
      %15 = sbr.rel (0) target = $region5
    $region4: #{tpu_custom_call.1} parent=1 // pred_region
      _
    $region5: #{tpu_custom_call.1} parent=1 // pred_fallthru
      _
    // Predicated region
    $region6: #{tpu_custom_call.1} parent=1 // pred_check
      _
    $region7: #{tpu_custom_call.1} parent=1 // pred_check_branch
      %17 = sbr.rel (0) target = $region9
    $region8: #{tpu_custom_call.1} parent=1 // pred_region
      _
    $region9: #{tpu_custom_call.1} parent=1 // pred_fallthru
      _
    // Predicated region
    $region10: #{tpu_custom_call.1} parent=1 // pred_check
      _
    $region11: #{tpu_custom_call.1} parent=1 // pred_check_branch
      %19 = sbr.rel (0) target = $region13
    $region12: #{tpu_custom_call.1} parent=1 // pred_region
      _
    $region13: #{tpu_custom_call.1} parent=1 // pred_fallthru
      _
    // Predicated region
    $region14: #{tpu_custom_call.1} parent=1 // pred_check
      _
    $region15: #{tpu_custom_call.1} parent=1 // pred_check_branch
      %21 = sbr.rel (0) target = $region17
    $region16: #{tpu_custom_call.1} parent=1 // pred_region
      _
    $region17: #{tpu_custom_call.1} parent=1 // pred_fallthru
      _
    // Predicated region
    $region18: #{tpu_custom_call.1} parent=1 // pred_check
      _
    $region19: #{tpu_custom_call.1} parent=1 // pred_check_branch
      %23 = sbr.rel (0) target = $region21
    $region20: #{tpu_custom_call.1} parent=1 // pred_region
      _
    $region21: #{tpu_custom_call.1} parent=1 // pred_fallthru
      _
    // Predicated region
    $region22: #{tpu_custom_call.1} parent=1 // pred_check
      _
    $region23: #{tpu_custom_call.1} parent=1 // pred_check_branch
      %25 = sbr.rel (0) target = $region25
    $region24: #{tpu_custom_call.1} parent=1 // pred_region
      _
    $region25: #{tpu_custom_call.1} parent=1 // pred_fallthru
      _
    // Predicated region
    $region26: #{tpu_custom_call.1} parent=1 // pred_check
      _
    $region27: #{tpu_custom_call.1} parent=1 // pred_check_branch
      %27 = sbr.rel (0) target = $region29
    $region28: #{tpu_custom_call.1} parent=1 // pred_region
      _
    $region29: #{tpu_custom_call.1} parent=1 // pred_fallthru
      _
    // Predicated region
    $region30: #{tpu_custom_call.1} parent=1 // pred_check
      _
    $region31: #{tpu_custom_call.1} parent=1 // pred_check_branch
      %29 = sbr.rel (0) target = $region33
    $region32: #{tpu_custom_call.1} parent=1 // pred_region
      _
    $region33: #{tpu_custom_call.1} parent=1 // pred_fallthru
      _
    %v31 = vld [vmem:[%s4] sm:$0xf]
    %v32 = vld [vmem:[%s0] sm:$0xf]
    %v33 = vld [vmem:[%s0 + $0x4] sm:$0xf]
    %v34 = vunpack.c.l.bf16 %v32
    %v35 = vunpack.c.l.bf16 %v33
    %vm36 = vcmask 392192
    %v37 = vsel %vm36, %v34, 0.0
    %v38 = vrot.slane %v37, 4
    %v39 = vadd.f32 %v37, %v38
    %v40 = vrot.slane %v39, 2
    %v41 = vadd.f32 %v39, %v40
    %v42 = vrot.slane %v41, 1
    %v43 = vadd.f32 %v41, %v42
    %v44 = vsel %vm36, %v35, 0.0
    %v45 = vrot.slane %v44, 4
    %v46 = vadd.f32 %v44, %v45
    %v47 = vrot.slane %v46, 2
    %v48 = vadd.f32 %v46, %v47
    %v49 = vrot.slane %v48, 1
    %v50 = vadd.f32 %v48, %v49
    %v51 = vrcp.pop 8.0
    %v52 = vmul.f32 %v43, %v51
    %v53 = vmul.f32 %v50, %v51
    %v54 = vpack.c.bf16 %v52, %v52
    %v55 = vpack.c.bf16 %v53, %v53
    %v56 = vld [vmem:[%s2] sm:$0xf]
    %v57 = vld [vmem:[%s2 + $0x4] sm:$0xf]
    %v58 = vld [vmem:[%s2 + $0x8] sm:$0xf]
    %v59 = vld [vmem:[%s2 + $0xc] sm:$0xf]
    %v60 = vld [vmem:[%s2 + $0x10] sm:$0xf]
    %v61 = vld [vmem:[%s2 + $0x14] sm:$0xf]
    %v62 = vlaneseq
    %v63 = vshrl.u32 %v62, 7
    %v64 = vsub.s32 0, %v63
    %v65 = vrot.slane %v31, %v64
    %v68 = vunpack.c.l.b16 %v54
    %v69 = vunpack.c.l.b16 %v55
    %vm70 = vcmask 1041409
    %v71 = vsel %vm70, %v69, %v68
    %v72 = vpack.c.b16 %v71, %v71
    %v79 = vunpack.c.l.b16 %v56
    %v80 = vunpack.c.l.b16 %v57
    %v81 = vunpack.c.l.b16 %v58
    %v82 = vunpack.c.l.b16 %v59
    %v83 = vunpack.c.l.b16 %v60
    %v84 = vunpack.c.l.b16 %v61
    %v85 = vpack.c.b16 %v80, %v79
    %v86 = vpack.c.b16 %v82, %v81
    %v87 = vpack.c.b16 %v84, %v83
    %v92 = vsel %vm36, %v72, 0
    %94 = vmatprep.subr.bf16.mxu0 0
    %95 = vmatpush1.bf16.msra.mxu0 0
    %96 = vmatprep.subr.bf16.mxu0 0
    %97 = vmatpush1.bf16.msra.mxu0 0
    %98 = vmatprep.subr.bf16.mxu0 0
    %99 = vmatpush1.bf16.msra.mxu0 0
    %100 = vmatprep.subr.bf16.mxu0 0
    %101 = vmatpush1.bf16.msra.mxu0 0
    %102 = vmatprep.subr.bf16.mxu0 0
    %103 = vmatpush1.bf16.msra.mxu0 0
    %104 = vmatprep.subr.bf16.mxu0 0
    %105 = vmatpush1.bf16.msra.mxu0 %v87
    %106 = vmatprep.subr.bf16.mxu0 0
    %107 = vmatpush1.bf16.msra.mxu0 %v86
    %108 = vmatprep.subr.bf16.mxu0 0
    %109 = vmatpush1.bf16.msra.mxu0 %v85
    %110 = vmatprep.subr.bf16.mxu0 0
    %111 = vmatpush2.bf16.msra.mxu0 0
    %112 = vmatprep.subr.bf16.mxu0 0
    %113 = vmatpush2.bf16.msra.mxu0 0
    %114 = vmatprep.subr.bf16.mxu0 0
    %115 = vmatpush2.bf16.msra.mxu0 0
    %116 = vmatprep.subr.bf16.mxu0 0
    %117 = vmatpush2.bf16.msra.mxu0 0
    %118 = vmatprep.subr.bf16.mxu0 0
    %119 = vmatpush2.bf16.msra.mxu0 0
    %120 = vmatprep.subr.bf16.mxu0 0
    %121 = vmatpush2.bf16.msra.mxu0 0
    %122 = vmatprep.subr.bf16.mxu0 0
    %123 = vmatpush2.bf16.msra.mxu0 0
    %124 = vmatprep.subr.bf16.mxu0 0
    %125 = vmatpush2.bf16.msra.mxu0 0
    %126 = vmatprep.mubr.bf16.mxu0 0
    %127 = vmatmul.mubr.bf16.gmra.mxu0 %v92
    %v128 = vpop.f32.mrf.mxu0
    %v129 = vadd.f32 %v65, %v128
    %v130 = vpop.f32.mrf.mxu0
    %v131 = vpop.f32.mrf.mxu0
    %v132 = vpop.f32.mrf.mxu0
    %133 = vdwg.mxu0
    %v134 = vpack.c.bf16 %v129, %v129
    %v135 = vld [vmem:[%s3] sm:$0xf]
    %v136 = vld [vmem:[%s3 + $0x4] sm:$0xf]
    %v137 = vld [vmem:[%s3 + $0x8] sm:$0xf]
    %v138 = vld [vmem:[%s3 + $0xc] sm:$0xf]
    %v139 = vlaneseq
    %v140 = vshrl.u32 %v139, 7
    %v141 = vsub.s32 1, %v140
    %v142 = vrot.slane %v31, %v141
    %v147 = vunpack.c.l.b16 %v135
    %v148 = vunpack.c.l.b16 %v136
    %v149 = vunpack.c.l.b16 %v137
    %v150 = vunpack.c.l.b16 %v138
    %v151 = vpack.c.b16 %v148, %v147
    %v152 = vpack.c.b16 %v150, %v149
    %vm155 = vcmask 261120
    %v157 = vsel %vm155, %v134, 0
    %159 = vmatprep.subr.bf16.mxu0 0
    %160 = vmatpush1.bf16.msra.mxu0 0
    %161 = vmatprep.subr.bf16.mxu0 0
    %162 = vmatpush1.bf16.msra.mxu0 0
    %163 = vmatprep.subr.bf16.mxu0 0
    %164 = vmatpush1.bf16.msra.mxu0 0
    %165 = vmatprep.subr.bf16.mxu0 0
    %166 = vmatpush1.bf16.msra.mxu0 0
    %167 = vmatprep.subr.bf16.mxu0 0
    %168 = vmatpush1.bf16.msra.mxu0 0
    %169 = vmatprep.subr.bf16.mxu0 0
    %170 = vmatpush1.bf16.msra.mxu0 0
    %171 = vmatprep.subr.bf16.mxu0 0
    %172 = vmatpush1.bf16.msra.mxu0 %v152
    %173 = vmatprep.subr.bf16.mxu0 0
    %174 = vmatpush1.bf16.msra.mxu0 %v151
    %175 = vmatprep.subr.bf16.mxu0 0
    %176 = vmatpush2.bf16.msra.mxu0 0
    %177 = vmatprep.subr.bf16.mxu0 0
    %178 = vmatpush2.bf16.msra.mxu0 0
    %179 = vmatprep.subr.bf16.mxu0 0
    %180 = vmatpush2.bf16.msra.mxu0 0
    %181 = vmatprep.subr.bf16.mxu0 0
    %182 = vmatpush2.bf16.msra.mxu0 0
    %183 = vmatprep.subr.bf16.mxu0 0
    %184 = vmatpush2.bf16.msra.mxu0 0
    %185 = vmatprep.subr.bf16.mxu0 0
    %186 = vmatpush2.bf16.msra.mxu0 0
    %187 = vmatprep.subr.bf16.mxu0 0
    %188 = vmatpush2.bf16.msra.mxu0 0
    %189 = vmatprep.subr.bf16.mxu0 0
    %190 = vmatpush2.bf16.msra.mxu0 0
    %191 = vmatprep.mubr.bf16.mxu0 0
    %192 = vmatmul.mubr.bf16.gmra.mxu0 %v157
    %v193 = vpop.f32.mrf.mxu0
    %v194 = vadd.f32 %v142, %v193
    %v195 = vpop.f32.mrf.mxu0
    %v196 = vpop.f32.mrf.mxu0
    %v197 = vpop.f32.mrf.mxu0
    %198 = vdwg.mxu0
    %v199 = vmul.f32 %v194, 0.5
    %v200 = vld [vmem:[%s5] sm:$0xf]
    %v201 = vld [vmem:[%s5 + $0x4] sm:$0xf]
    %v202 = vld [vmem:[%s5 + $0x8] sm:$0xf]
    %v203 = vld [vmem:[%s5 + $0xc] sm:$0xf]
    %v204 = vld [vmem:[%s5 + $0x10] sm:$0xf]
    %v205 = vld [vmem:[%s5 + $0x14] sm:$0xf]
    %v206 = vld [vmem:[%s5 + $0x18] sm:$0xf]
    %v207 = vld [vmem:[%s5 + $0x1c] sm:$0xf]
    %v208 = vld [vmem:[%s6] sm:$0xff]
    %v209 = vld [vmem:[%s6 + $0x8] sm:$0xff]
    %v210 = vld [vmem:[%s6 + $0x10] sm:$0xff]
    %v211 = vld [vmem:[%s6 + $0x18] sm:$0xff]
    %v212 = vld [vmem:[%s6 + $0x20] sm:$0xff]
    %v213 = vld [vmem:[%s6 + $0x28] sm:$0xff]
    %v214 = vld [vmem:[%s6 + $0x30] sm:$0xff]
    %v215 = vld [vmem:[%s6 + $0x38] sm:$0xff]
    %v216 = vld [vmem:[%s7] sm:$0xff]
    %v217 = vld [vmem:[%s1] sm:$0xff]
    %v218 = vld [vmem:[%s1 + $0x8] sm:$0xff]
    %v219 = vld [vmem:[%s1 + $0x10] sm:$0xff]
    %v220 = vld [vmem:[%s1 + $0x18] sm:$0xff]
    %222 = vset.pattern.permute.xlu0 0
    %223 = vperm.xlu0 %222, %v208
    %v224 = vpop.permute.xlu0 %223
    %227 = vset.pattern.permute.xlu0 0
    %228 = vperm.xlu0 %227, %v209
    %v229 = vpop.permute.xlu0 %228
    %232 = vset.pattern.permute.xlu0 0
    %233 = vperm.xlu0 %232, %v210
    %v234 = vpop.permute.xlu0 %233
    %237 = vset.pattern.permute.xlu0 0
    %238 = vperm.xlu0 %237, %v211
    %v239 = vpop.permute.xlu0 %238
    %242 = vset.pattern.permute.xlu0 0
    %243 = vperm.xlu0 %242, %v212
    %v244 = vpop.permute.xlu0 %243
    %247 = vset.pattern.permute.xlu0 0
    %248 = vperm.xlu0 %247, %v213
    %v249 = vpop.permute.xlu0 %248
    %252 = vset.pattern.permute.xlu0 0
    %253 = vperm.xlu0 %252, %v214
    %v254 = vpop.permute.xlu0 %253
    %257 = vset.pattern.permute.xlu0 0
    %258 = vperm.xlu0 %257, %v215
    %v259 = vpop.permute.xlu0 %258
    %v269 = vunpack.c.l.b16 %v200
    %v270 = vunpack.c.l.b16 %v201
    %v271 = vunpack.c.l.b16 %v202
    %v272 = vunpack.c.l.b16 %v203
    %v273 = vunpack.c.l.b16 %v204
    %v274 = vunpack.c.l.b16 %v205
    %v275 = vunpack.c.l.b16 %v206
    %v276 = vunpack.c.l.b16 %v207
    %v277 = vpack.c.b16 %v270, %v269
    %v278 = vpack.c.b16 %v272, %v271
    %v279 = vpack.c.b16 %v274, %v273
    %v280 = vpack.c.b16 %v276, %v275
    %v285 = vunpack.c.l.b16 %v217
    %v286 = vunpack.c.h.b16 %v217
    %v287 = vunpack.c.l.b16 %v218
    %v288 = vunpack.c.h.b16 %v218
    %v289 = vunpack.c.l.b16 %v219
    %v290 = vunpack.c.h.b16 %v219
    %v291 = vunpack.c.l.b16 %v220
    %v292 = vunpack.c.h.b16 %v220
    %v293 = vpack.c.b16 %v287, %v285
    %v294 = vpack.c.b16 %v288, %v286
    %v295 = vpack.c.b16 %v291, %v289
    %v296 = vpack.c.b16 %v292, %v290
    %v302 = vsel %vm155, %v277, 0
    %v305 = vsel %vm155, %v278, 0
    %v308 = vsel %vm155, %v279, 0
    %v311 = vsel %vm155, %v280, 0
    %313 = vmatprep.subr.bf16.mxu0 0
    %314 = vmatpush1.bf16.msra.mxu0 0
    %315 = vmatprep.subr.bf16.mxu0 0
    %316 = vmatpush1.bf16.msra.mxu0 0
    %317 = vmatprep.subr.bf16.mxu0 0
    %318 = vmatpush1.bf16.msra.mxu0 0
    %319 = vmatprep.subr.bf16.mxu0 0
    %320 = vmatpush1.bf16.msra.mxu0 0
    %321 = vmatprep.subr.bf16.mxu0 0
    %322 = vmatpush1.bf16.msra.mxu0 0
    %323 = vmatprep.subr.bf16.mxu0 0
    %324 = vmatpush1.bf16.msra.mxu0 0
    %325 = vmatprep.subr.bf16.mxu0 %v296
    %326 = vmatpush1.bf16.msra.mxu0 %v295
    %327 = vmatprep.subr.bf16.mxu0 %v294
    %328 = vmatpush1.bf16.msra.mxu0 %v293
    %329 = vmatprep.subr.bf16.mxu0 0
    %330 = vmatpush2.bf16.msra.mxu0 0
    %331 = vmatprep.subr.bf16.mxu0 0
    %332 = vmatpush2.bf16.msra.mxu0 0
    %333 = vmatprep.subr.bf16.mxu0 0
    %334 = vmatpush2.bf16.msra.mxu0 0
    %335 = vmatprep.subr.bf16.mxu0 0
    %336 = vmatpush2.bf16.msra.mxu0 0
    %337 = vmatprep.subr.bf16.mxu0 0
    %338 = vmatpush2.bf16.msra.mxu0 0
    %339 = vmatprep.subr.bf16.mxu0 0
    %340 = vmatpush2.bf16.msra.mxu0 0
    %341 = vmatprep.subr.bf16.mxu0 0
    %342 = vmatpush2.bf16.msra.mxu0 0
    %343 = vmatprep.subr.bf16.mxu0 0
    %344 = vmatpush2.bf16.msra.mxu0 0
    %345 = vmatprep.mubr.bf16.mxu0 0
    %346 = vmatmul.mubr.bf16.gmra.mxu0 %v302
    %v347 = vpop.f32.mrf.mxu0
    %v348 = vadd.f32 %v224, %v347
    %v349 = vpop.f32.mrf.mxu0
    %v350 = vadd.f32 %v224, %v349
    %v351 = vpop.f32.mrf.mxu0
    %v352 = vadd.f32 %v229, %v351
    %v353 = vpop.f32.mrf.mxu0
    %v354 = vadd.f32 %v229, %v353
    %355 = vmatprep.mubr.bf16.mxu0 0
    %356 = vmatmul.mubr.bf16.gmra.mxu0 %v305
    %v357 = vpop.f32.mrf.mxu0
    %v358 = vadd.f32 %v234, %v357
    %v359 = vpop.f32.mrf.mxu0
    %v360 = vadd.f32 %v234, %v359
    %v361 = vpop.f32.mrf.mxu0
    %v362 = vadd.f32 %v239, %v361
    %v363 = vpop.f32.mrf.mxu0
    %v364 = vadd.f32 %v239, %v363
    %365 = vmatprep.mubr.bf16.mxu0 0
    %366 = vmatmul.mubr.bf16.gmra.mxu0 %v308
    %v367 = vpop.f32.mrf.mxu0
    %v368 = vadd.f32 %v244, %v367
    %v369 = vpop.f32.mrf.mxu0
    %v370 = vadd.f32 %v244, %v369
    %v371 = vpop.f32.mrf.mxu0
    %v372 = vadd.f32 %v249, %v371
    %v373 = vpop.f32.mrf.mxu0
    %v374 = vadd.f32 %v249, %v373
    %375 = vmatprep.mubr.bf16.mxu0 0
    %376 = vmatmul.mubr.bf16.gmra.mxu0 %v311
    %v377 = vpop.f32.mrf.mxu0
    %v378 = vadd.f32 %v254, %v377
    %v379 = vpop.f32.mrf.mxu0
    %v380 = vadd.f32 %v254, %v379
    %v381 = vpop.f32.mrf.mxu0
    %v382 = vadd.f32 %v259, %v381
    %v383 = vpop.f32.mrf.mxu0
    %v384 = vadd.f32 %v259, %v383
    %385 = vdwg.mxu0
    %v386 = vpack.c.bf16 %v352, %v348
    %v387 = vpack.c.bf16 %v354, %v350
    %v388 = vpack.c.bf16 %v362, %v358
    %v389 = vpack.c.bf16 %v364, %v360
    %v390 = vpack.c.bf16 %v372, %v368
    %v391 = vpack.c.bf16 %v374, %v370
    %v392 = vpack.c.bf16 %v382, %v378
    %v393 = vpack.c.bf16 %v384, %v380
    %v394 = vlaneseq
    %v395 = vshrl.u32 %v394, 7
    %v396 = vsub.s32 0, %v395
    %v397 = vrot.slane %v199, %v396
    %v398 = vmul.f32 %v216, %v397
    %v399 = vpack.c.bf16 %v398, %v398
    %v401 = vsel %vm155, %v399, 0
    %403 = vmatprep.subr.bf16.mxu0 0
    %404 = vmatpush1.bf16.msra.mxu0 0
    %405 = vmatprep.subr.bf16.mxu0 0
    %406 = vmatpush1.bf16.msra.mxu0 0
    %407 = vmatprep.subr.bf16.mxu0 0
    %408 = vmatpush1.bf16.msra.mxu0 0
    %409 = vmatprep.subr.bf16.mxu0 0
    %410 = vmatpush1.bf16.msra.mxu0 0
    %411 = vmatprep.subr.bf16.mxu0 0
    %412 = vmatpush1.bf16.msra.mxu0 0
    %413 = vmatprep.subr.bf16.mxu0 0
    %414 = vmatpush1.bf16.msra.mxu0 0
    %415 = vmatprep.subr.bf16.mxu0 %v389
    %416 = vmatpush1.bf16.msra.mxu0 %v388
    %417 = vmatprep.subr.bf16.mxu0 %v387
    %418 = vmatpush1.bf16.msra.mxu0 %v386
    %419 = vmatprep.subr.bf16.mxu0 0
    %420 = vmatpush2.bf16.msra.mxu0 0
    %421 = vmatprep.subr.bf16.mxu0 0
    %422 = vmatpush2.bf16.msra.mxu0 0
    %423 = vmatprep.subr.bf16.mxu0 0
    %424 = vmatpush2.bf16.msra.mxu0 0
    %425 = vmatprep.subr.bf16.mxu0 0
    %426 = vmatpush2.bf16.msra.mxu0 0
    %427 = vmatprep.subr.bf16.mxu0 0
    %428 = vmatpush2.bf16.msra.mxu0 0
    %429 = vmatprep.subr.bf16.mxu0 0
    %430 = vmatpush2.bf16.msra.mxu0 0
    %431 = vmatprep.subr.bf16.mxu0 0
    %432 = vmatpush2.bf16.msra.mxu0 0
    %433 = vmatprep.subr.bf16.mxu0 0
    %434 = vmatpush2.bf16.msra.mxu0 0
    %435 = vmatprep.mubr.bf16.mxu0 0
    %436 = vmatmul.mubr.bf16.gmra.mxu0 %v401
    %v437 = vpop.f32.mrf.mxu0
    %v438 = vadd.f32 0.0, %v437
    %v439 = vpop.f32.mrf.mxu0
    %v440 = vadd.f32 0.0, %v439
    %v441 = vpop.f32.mrf.mxu0
    %v442 = vpop.f32.mrf.mxu0
    %443 = vdwg.mxu0
    %v444 = vmax.f32 %v438, %v440
    %445 = vmax.xlane.f32.xlu0 %v444
    %v446 = vpop.xlane.xlu0 %445
    %v447 = vsub.f32 %v438, %v446
    %v448 = vsub.f32 %v440, %v446
    %v449 = vmul.f32 %v447, 1.442695
    %v450 = vpow.pop %v449
    %v451 = vmul.f32 %v448, 1.442695
    %v452 = vpow.pop %v451
    %v453 = vadd.f32 %v450, %v452
    %454 = vadd.xlane.f32.xlu0 %v453
    %v455 = vpop.xlane.xlu0 %454
    %v456 = vrcp.pop %v455
    %v457 = vmul.f32 %v450, %v456
    %v458 = vmul.f32 %v452, %v456
    %v459 = vpack.c.bf16 %v457, %v457
    %v460 = vpack.c.bf16 %v458, %v458
    %461 = vmatprep.subr.bf16.mxu0 0
    %462 = vmatpush1.bf16.xpose.msra.mxu0 0
    %463 = vmatprep.subr.bf16.mxu0 0
    %464 = vmatpush1.bf16.xpose.msra.mxu0 0
    %465 = vmatprep.subr.bf16.mxu0 0
    %466 = vmatpush1.bf16.xpose.msra.mxu0 0
    %467 = vmatprep.subr.bf16.mxu0 0
    %468 = vmatpush1.bf16.xpose.msra.mxu0 0
    %469 = vmatprep.subr.bf16.mxu0 0
    %470 = vmatpush1.bf16.xpose.msra.mxu0 0
    %471 = vmatprep.subr.bf16.mxu0 0
    %472 = vmatpush1.bf16.xpose.msra.mxu0 0
    %473 = vmatprep.subr.bf16.mxu0 %v393
    %474 = vmatpush1.bf16.xpose.msra.mxu0 %v392
    %475 = vmatprep.subr.bf16.mxu0 %v391
    %476 = vmatpush1.bf16.xpose.msra.mxu0 %v390
    %477 = vmatprep.subr.bf16.mxu0 0
    %478 = vmatpush2.bf16.xpose.msra.mxu0 0
    %479 = vmatprep.subr.bf16.mxu0 0
    %480 = vmatpush2.bf16.xpose.msra.mxu0 0
    %481 = vmatprep.subr.bf16.mxu0 0
    %482 = vmatpush2.bf16.xpose.msra.mxu0 0
    %483 = vmatprep.subr.bf16.mxu0 0
    %484 = vmatpush2.bf16.xpose.msra.mxu0 0
    %485 = vmatprep.subr.bf16.mxu0 0
    %486 = vmatpush2.bf16.xpose.msra.mxu0 0
    %487 = vmatprep.subr.bf16.mxu0 0
    %488 = vmatpush2.bf16.xpose.msra.mxu0 0
    %489 = vmatprep.subr.bf16.mxu0 0
    %490 = vmatpush2.bf16.xpose.msra.mxu0 0
    %491 = vmatprep.subr.bf16.mxu0 0
    %492 = vmatpush2.bf16.xpose.msra.mxu0 0
    %493 = vmatprep.mubr.bf16.mxu0 %v460
    %494 = vmatmul.mubr.bf16.gmra.mxu0 %v459
    %v495 = vpop.f32.mrf.mxu0
    %v496 = vadd.f32 0.0, %v495
    %v497 = vpop.f32.mrf.mxu0
    %v498 = vpop.f32.mrf.mxu0
    %v499 = vpop.f32.mrf.mxu0
    %500 = vdwg.mxu0
    %v501 = vmul.f32 %v216, %v496
    %v502 = vsel %vm155, %v501, 0.0
    %v503 = vrot.slane %v502, 4
    %v504 = vadd.f32 %v502, %v503
    %v505 = vrot.slane %v504, 2
    %v506 = vadd.f32 %v504, %v505
    %v507 = vrot.slane %v506, 1
    %v508 = vadd.f32 %v506, %v507
    %s509 = scalar_lea.vmem %s1, 32
    %v510 = vld [vmem:[%s509] sm:$0xff]
    %v511 = vld [vmem:[%s509 + $0x8] sm:$0xff]
    %v512 = vld [vmem:[%s509 + $0x10] sm:$0xff]
    %v513 = vld [vmem:[%s509 + $0x18] sm:$0xff]
    %v518 = vunpack.c.l.b16 %v510
    %v519 = vunpack.c.h.b16 %v510
    %v520 = vunpack.c.l.b16 %v511
    %v521 = vunpack.c.h.b16 %v511
    %v522 = vunpack.c.l.b16 %v512
    %v523 = vunpack.c.h.b16 %v512
    %v524 = vunpack.c.l.b16 %v513
    %v525 = vunpack.c.h.b16 %v513
    %v526 = vpack.c.b16 %v520, %v518
    %v527 = vpack.c.b16 %v521, %v519
    %v528 = vpack.c.b16 %v524, %v522
    %v529 = vpack.c.b16 %v525, %v523
    %534 = vmatprep.subr.bf16.mxu0 0
    %535 = vmatpush1.bf16.msra.mxu0 0
    %536 = vmatprep.subr.bf16.mxu0 0
    %537 = vmatpush1.bf16.msra.mxu0 0
    %538 = vmatprep.subr.bf16.mxu0 0
    %539 = vmatpush1.bf16.msra.mxu0 0
    %540 = vmatprep.subr.bf16.mxu0 0
    %541 = vmatpush1.bf16.msra.mxu0 0
    %542 = vmatprep.subr.bf16.mxu0 0
    %543 = vmatpush1.bf16.msra.mxu0 0
    %544 = vmatprep.subr.bf16.mxu0 0
    %545 = vmatpush1.bf16.msra.mxu0 0
    %546 = vmatprep.subr.bf16.mxu0 %v529
    %547 = vmatpush1.bf16.msra.mxu0 %v528
    %548 = vmatprep.subr.bf16.mxu0 %v527
    %549 = vmatpush1.bf16.msra.mxu0 %v526
    %550 = vmatprep.subr.bf16.mxu0 0
    %551 = vmatpush2.bf16.msra.mxu0 0
    %552 = vmatprep.subr.bf16.mxu0 0
    %553 = vmatpush2.bf16.msra.mxu0 0
    %554 = vmatprep.subr.bf16.mxu0 0
    %555 = vmatpush2.bf16.msra.mxu0 0
    %556 = vmatprep.subr.bf16.mxu0 0
    %557 = vmatpush2.bf16.msra.mxu0 0
    %558 = vmatprep.subr.bf16.mxu0 0
    %559 = vmatpush2.bf16.msra.mxu0 0
    %560 = vmatprep.subr.bf16.mxu0 0
    %561 = vmatpush2.bf16.msra.mxu0 0
    %562 = vmatprep.subr.bf16.mxu0 0
    %563 = vmatpush2.bf16.msra.mxu0 0
    %564 = vmatprep.subr.bf16.mxu0 0
    %565 = vmatpush2.bf16.msra.mxu0 0
    %566 = vmatprep.mubr.bf16.mxu0 0
    %567 = vmatmul.mubr.bf16.gmra.mxu0 %v302
    %v568 = vpop.f32.mrf.mxu0
    %v569 = vadd.f32 %v224, %v568
    %v570 = vpop.f32.mrf.mxu0
    %v571 = vadd.f32 %v224, %v570
    %v572 = vpop.f32.mrf.mxu0
    %v573 = vadd.f32 %v229, %v572
    %v574 = vpop.f32.mrf.mxu0
    %v575 = vadd.f32 %v229, %v574
    %576 = vmatprep.mubr.bf16.mxu0 0
    %577 = vmatmul.mubr.bf16.gmra.mxu0 %v305
    %v578 = vpop.f32.mrf.mxu0
    %v579 = vadd.f32 %v234, %v578
    %v580 = vpop.f32.mrf.mxu0
    %v581 = vadd.f32 %v234, %v580
    %v582 = vpop.f32.mrf.mxu0
    %v583 = vadd.f32 %v239, %v582
    %v584 = vpop.f32.mrf.mxu0
    %v585 = vadd.f32 %v239, %v584
    %586 = vmatprep.mubr.bf16.mxu0 0
    %587 = vmatmul.mubr.bf16.gmra.mxu0 %v308
    %v588 = vpop.f32.mrf.mxu0
    %v589 = vadd.f32 %v244, %v588
    %v590 = vpop.f32.mrf.mxu0
    %v591 = vadd.f32 %v244, %v590
    %v592 = vpop.f32.mrf.mxu0
    %v593 = vadd.f32 %v249, %v592
    %v594 = vpop.f32.mrf.mxu0
    %v595 = vadd.f32 %v249, %v594
    %596 = vmatprep.mubr.bf16.mxu0 0
    %597 = vmatmul.mubr.bf16.gmra.mxu0 %v311
    %v598 = vpop.f32.mrf.mxu0
    %v599 = vadd.f32 %v254, %v598
    %v600 = vpop.f32.mrf.mxu0
    %v601 = vadd.f32 %v254, %v600
    %v602 = vpop.f32.mrf.mxu0
    %v603 = vadd.f32 %v259, %v602
    %v604 = vpop.f32.mrf.mxu0
    %v605 = vadd.f32 %v259, %v604
    %606 = vdwg.mxu0
    %v607 = vpack.c.bf16 %v573, %v569
    %v608 = vpack.c.bf16 %v575, %v571
    %v609 = vpack.c.bf16 %v583, %v579
    %v610 = vpack.c.bf16 %v585, %v581
    %v611 = vpack.c.bf16 %v593, %v589
    %v612 = vpack.c.bf16 %v595, %v591
    %v613 = vpack.c.bf16 %v603, %v599
    %v614 = vpack.c.bf16 %v605, %v601
    %v615 = vlaneseq
    %v616 = vshrl.u32 %v615, 7
    %v617 = vsub.s32 1, %v616
    %v618 = vrot.slane %v199, %v617
    %v619 = vmul.f32 %v216, %v618
    %v620 = vpack.c.bf16 %v619, %v619
    %v622 = vsel %vm155, %v620, 0
    %624 = vmatprep.subr.bf16.mxu0 0
    %625 = vmatpush1.bf16.msra.mxu0 0
    %626 = vmatprep.subr.bf16.mxu0 0
    %627 = vmatpush1.bf16.msra.mxu0 0
    %628 = vmatprep.subr.bf16.mxu0 0
    %629 = vmatpush1.bf16.msra.mxu0 0
    %630 = vmatprep.subr.bf16.mxu0 0
    %631 = vmatpush1.bf16.msra.mxu0 0
    %632 = vmatprep.subr.bf16.mxu0 0
    %633 = vmatpush1.bf16.msra.mxu0 0
    %634 = vmatprep.subr.bf16.mxu0 0
    %635 = vmatpush1.bf16.msra.mxu0 0
    %636 = vmatprep.subr.bf16.mxu0 %v610
    %637 = vmatpush1.bf16.msra.mxu0 %v609
    %638 = vmatprep.subr.bf16.mxu0 %v608
    %639 = vmatpush1.bf16.msra.mxu0 %v607
    %640 = vmatprep.subr.bf16.mxu0 0
    %641 = vmatpush2.bf16.msra.mxu0 0
    %642 = vmatprep.subr.bf16.mxu0 0
    %643 = vmatpush2.bf16.msra.mxu0 0
    %644 = vmatprep.subr.bf16.mxu0 0
    %645 = vmatpush2.bf16.msra.mxu0 0
    %646 = vmatprep.subr.bf16.mxu0 0
    %647 = vmatpush2.bf16.msra.mxu0 0
    %648 = vmatprep.subr.bf16.mxu0 0
    %649 = vmatpush2.bf16.msra.mxu0 0
    %650 = vmatprep.subr.bf16.mxu0 0
    %651 = vmatpush2.bf16.msra.mxu0 0
    %652 = vmatprep.subr.bf16.mxu0 0
    %653 = vmatpush2.bf16.msra.mxu0 0
    %654 = vmatprep.subr.bf16.mxu0 0
    %655 = vmatpush2.bf16.msra.mxu0 0
    %656 = vmatprep.mubr.bf16.mxu0 0
    %657 = vmatmul.mubr.bf16.gmra.mxu0 %v622
    %v658 = vpop.f32.mrf.mxu0
    %v659 = vadd.f32 0.0, %v658
    %v660 = vpop.f32.mrf.mxu0
    %v661 = vadd.f32 0.0, %v660
    %v662 = vpop.f32.mrf.mxu0
    %v663 = vpop.f32.mrf.mxu0
    %664 = vdwg.mxu0
    %v665 = vmax.f32 %v659, %v661
    %666 = vmax.xlane.f32.xlu0 %v665
    %v667 = vpop.xlane.xlu0 %666
    %v668 = vsub.f32 %v659, %v667
    %v669 = vsub.f32 %v661, %v667
    %v670 = vmul.f32 %v668, 1.442695
    %v671 = vpow.pop %v670
    %v672 = vmul.f32 %v669, 1.442695
    %v673 = vpow.pop %v672
    %v674 = vadd.f32 %v671, %v673
    %675 = vadd.xlane.f32.xlu0 %v674
    %v676 = vpop.xlane.xlu0 %675
    %v677 = vrcp.pop %v676
    %v678 = vmul.f32 %v671, %v677
    %v679 = vmul.f32 %v673, %v677
    %v680 = vpack.c.bf16 %v678, %v678
    %v681 = vpack.c.bf16 %v679, %v679
    %682 = vmatprep.subr.bf16.mxu0 0
    %683 = vmatpush1.bf16.xpose.msra.mxu0 0
    %684 = vmatprep.subr.bf16.mxu0 0
    %685 = vmatpush1.bf16.xpose.msra.mxu0 0
    %686 = vmatprep.subr.bf16.mxu0 0
    %687 = vmatpush1.bf16.xpose.msra.mxu0 0
    %688 = vmatprep.subr.bf16.mxu0 0
    %689 = vmatpush1.bf16.xpose.msra.mxu0 0
    %690 = vmatprep.subr.bf16.mxu0 0
    %691 = vmatpush1.bf16.xpose.msra.mxu0 0
    %692 = vmatprep.subr.bf16.mxu0 0
    %693 = vmatpush1.bf16.xpose.msra.mxu0 0
    %694 = vmatprep.subr.bf16.mxu0 %v614
    %695 = vmatpush1.bf16.xpose.msra.mxu0 %v613
    %696 = vmatprep.subr.bf16.mxu0 %v612
    %697 = vmatpush1.bf16.xpose.msra.mxu0 %v611
    %698 = vmatprep.subr.bf16.mxu0 0
    %699 = vmatpush2.bf16.xpose.msra.mxu0 0
    %700 = vmatprep.subr.bf16.mxu0 0
    %701 = vmatpush2.bf16.xpose.msra.mxu0 0
    %702 = vmatprep.subr.bf16.mxu0 0
    %703 = vmatpush2.bf16.xpose.msra.mxu0 0
    %704 = vmatprep.subr.bf16.mxu0 0
    %705 = vmatpush2.bf16.xpose.msra.mxu0 0
    %706 = vmatprep.subr.bf16.mxu0 0
    %707 = vmatpush2.bf16.xpose.msra.mxu0 0
    %708 = vmatprep.subr.bf16.mxu0 0
    %709 = vmatpush2.bf16.xpose.msra.mxu0 0
    %710 = vmatprep.subr.bf16.mxu0 0
    %711 = vmatpush2.bf16.xpose.msra.mxu0 0
    %712 = vmatprep.subr.bf16.mxu0 0
    %713 = vmatpush2.bf16.xpose.msra.mxu0 0
    %714 = vmatprep.mubr.bf16.mxu0 %v681
    %715 = vmatmul.mubr.bf16.gmra.mxu0 %v680
    %v716 = vpop.f32.mrf.mxu0
    %v717 = vadd.f32 0.0, %v716
    %v718 = vpop.f32.mrf.mxu0
    %v719 = vpop.f32.mrf.mxu0
    %v720 = vpop.f32.mrf.mxu0
    %721 = vdwg.mxu0
    %v722 = vmul.f32 %v216, %v717
    %v723 = vsel %vm155, %v722, 0.0
    %v724 = vrot.slane %v723, 4
    %v725 = vadd.f32 %v723, %v724
    %v726 = vrot.slane %v725, 2
    %v727 = vadd.f32 %v725, %v726
    %v728 = vrot.slane %v727, 1
    %v729 = vadd.f32 %v727, %v728
    %vm730 = vcmask 1040384
    %v731 = vsel %vm730, %v508, %v729
    %v732 = vpack.c.bf16 %v731, %v731
    %s733 = scalar_lea.vmem %s3, 16
    %v734 = vld [vmem:[%s733] sm:$0xf]
    %v735 = vld [vmem:[%s733 + $0x4] sm:$0xf]
    %v736 = vld [vmem:[%s733 + $0x8] sm:$0xf]
    %v737 = vld [vmem:[%s733 + $0xc] sm:$0xf]
    %v738 = vlaneseq
    %v739 = vshrl.u32 %v738, 7
    %v740 = vsub.s32 2, %v739
    %v741 = vrot.slane %v31, %v740
    %v746 = vunpack.c.l.b16 %v734
    %v747 = vunpack.c.l.b16 %v735
    %v748 = vunpack.c.l.b16 %v736
    %v749 = vunpack.c.l.b16 %v737
    %v750 = vpack.c.b16 %v747, %v746
    %v751 = vpack.c.b16 %v749, %v748
    %v755 = vsel %vm155, %v732, 0
    %757 = vmatprep.subr.bf16.mxu0 0
    %758 = vmatpush1.bf16.msra.mxu0 0
    %759 = vmatprep.subr.bf16.mxu0 0
    %760 = vmatpush1.bf16.msra.mxu0 0
    %761 = vmatprep.subr.bf16.mxu0 0
    %762 = vmatpush1.bf16.msra.mxu0 0
    %763 = vmatprep.subr.bf16.mxu0 0
    %764 = vmatpush1.bf16.msra.mxu0 0
    %765 = vmatprep.subr.bf16.mxu0 0
    %766 = vmatpush1.bf16.msra.mxu0 0
    %767 = vmatprep.subr.bf16.mxu0 0
    %768 = vmatpush1.bf16.msra.mxu0 0
    %769 = vmatprep.subr.bf16.mxu0 0
    %770 = vmatpush1.bf16.msra.mxu0 %v751
    %771 = vmatprep.subr.bf16.mxu0 0
    %772 = vmatpush1.bf16.msra.mxu0 %v750
    %773 = vmatprep.subr.bf16.mxu0 0
    %774 = vmatpush2.bf16.msra.mxu0 0
    %775 = vmatprep.subr.bf16.mxu0 0
    %776 = vmatpush2.bf16.msra.mxu0 0
    %777 = vmatprep.subr.bf16.mxu0 0
    %778 = vmatpush2.bf16.msra.mxu0 0
    %779 = vmatprep.subr.bf16.mxu0 0
    %780 = vmatpush2.bf16.msra.mxu0 0
    %781 = vmatprep.subr.bf16.mxu0 0
    %782 = vmatpush2.bf16.msra.mxu0 0
    %783 = vmatprep.subr.bf16.mxu0 0
    %784 = vmatpush2.bf16.msra.mxu0 0
    %785 = vmatprep.subr.bf16.mxu0 0
    %786 = vmatpush2.bf16.msra.mxu0 0
    %787 = vmatprep.subr.bf16.mxu0 0
    %788 = vmatpush2.bf16.msra.mxu0 0
    %789 = vmatprep.mubr.bf16.mxu0 0
    %790 = vmatmul.mubr.bf16.gmra.mxu0 %v755
    %v791 = vpop.f32.mrf.mxu0
    %v792 = vadd.f32 %v741, %v791
    %v793 = vpop.f32.mrf.mxu0
    %v794 = vpop.f32.mrf.mxu0
    %v795 = vpop.f32.mrf.mxu0
    %796 = vdwg.mxu0
    %v797 = vadd.f32 %v792, %v129
    %v798 = vpack.c.bf16 %v797, %v797
    %s799 = scalar_lea.vmem %s3, 32
    %v800 = vld [vmem:[%s799] sm:$0xf]
    %v801 = vld [vmem:[%s799 + $0x4] sm:$0xf]
    %v802 = vld [vmem:[%s799 + $0x8] sm:$0xf]
    %v803 = vld [vmem:[%s799 + $0xc] sm:$0xf]
    %v804 = vlaneseq
    %v805 = vshrl.u32 %v804, 7
    %v806 = vsub.s32 3, %v805
    %v807 = vrot.slane %v31, %v806
    %v812 = vunpack.c.l.b16 %v800
    %v813 = vunpack.c.l.b16 %v801
    %v814 = vunpack.c.l.b16 %v802
    %v815 = vunpack.c.l.b16 %v803
    %v816 = vpack.c.b16 %v813, %v812
    %v817 = vpack.c.b16 %v815, %v814
    %v821 = vsel %vm155, %v798, 0
    %823 = vmatprep.subr.bf16.mxu0 0
    %824 = vmatpush1.bf16.msra.mxu0 0
    %825 = vmatprep.subr.bf16.mxu0 0
    %826 = vmatpush1.bf16.msra.mxu0 0
    %827 = vmatprep.subr.bf16.mxu0 0
    %828 = vmatpush1.bf16.msra.mxu0 0
    %829 = vmatprep.subr.bf16.mxu0 0
    %830 = vmatpush1.bf16.msra.mxu0 0
    %831 = vmatprep.subr.bf16.mxu0 0
    %832 = vmatpush1.bf16.msra.mxu0 0
    %833 = vmatprep.subr.bf16.mxu0 0
    %834 = vmatpush1.bf16.msra.mxu0 0
    %835 = vmatprep.subr.bf16.mxu0 0
    %836 = vmatpush1.bf16.msra.mxu0 %v817
    %837 = vmatprep.subr.bf16.mxu0 0
    %838 = vmatpush1.bf16.msra.mxu0 %v816
    %839 = vmatprep.subr.bf16.mxu0 0
    %840 = vmatpush2.bf16.msra.mxu0 0
    %841 = vmatprep.subr.bf16.mxu0 0
    %842 = vmatpush2.bf16.msra.mxu0 0
    %843 = vmatprep.subr.bf16.mxu0 0
    %844 = vmatpush2.bf16.msra.mxu0 0
    %845 = vmatprep.subr.bf16.mxu0 0
    %846 = vmatpush2.bf16.msra.mxu0 0
    %847 = vmatprep.subr.bf16.mxu0 0
    %848 = vmatpush2.bf16.msra.mxu0 0
    %849 = vmatprep.subr.bf16.mxu0 0
    %850 = vmatpush2.bf16.msra.mxu0 0
    %851 = vmatprep.subr.bf16.mxu0 0
    %852 = vmatpush2.bf16.msra.mxu0 0
    %853 = vmatprep.subr.bf16.mxu0 0
    %854 = vmatpush2.bf16.msra.mxu0 0
    %855 = vmatprep.mubr.bf16.mxu0 0
    %856 = vmatmul.mubr.bf16.gmra.mxu0 %v821
    %v857 = vpop.f32.mrf.mxu0
    %v858 = vadd.f32 %v807, %v857
    %v859 = vpop.f32.mrf.mxu0
    %v860 = vpop.f32.mrf.mxu0
    %v861 = vpop.f32.mrf.mxu0
    %862 = vdwg.mxu0
    %vm863 = vcmask 254976
    %864 = vst.msk [vmem:[#allocation2] sm:$0x3] %vm863, %v858
    // Predicated region
    $region34: #{tpu_custom_call.1} parent=1 // pred_check
      _
    $region35: #{tpu_custom_call.1} parent=1 // pred_check_branch
      %866 = sbr.rel (0) target = $region37
    $region36: #{tpu_custom_call.1} parent=1 // pred_region
      %s868 = ssub.s32 32, 32
      %869 = vsyncadd [#allocation3], %s868
      %s871 = sshll.u32 [#allocation2], 4
      %s872 = int_to_ptr.vmem [resolvable:$true] %s871
      %874 = dma.vmem_to_hbm [thread:$0]  %s872, 32, %s8, [#allocation3]
    $region37: #{tpu_custom_call.1} parent=1 // pred_fallthru
      _
    // Predicated region
    $region38: #{tpu_custom_call.1} parent=1 // pred_check
      _
    $region39: #{tpu_custom_call.1} parent=1 // pred_check_branch
      %876 = sbr.rel (0) target = $region41
    $region40: #{tpu_custom_call.1} parent=1 // pred_region
      %877 = dma.done [#allocation3], 32
    $region41: #{tpu_custom_call.1} parent=1 // pred_fallthru
      _
    %878 = vsyncpa [#allocation3], 1

</llo_original>
